<compile_context>
chip_gen: v6e
topology: v6e:2x2x1
jax: 0.10.0
libtpu: 0.0.40
codegen_flags: <defaults>
</compile_context>

<pallas_src>
import jax
import jax.numpy as jnp
from jax.experimental import pallas as pl
from jax.experimental.pallas import tpu as pltpu

LEAKY_SLOPE = 0.01   # nn.LeakyReLU default negative_slope
BN_EPS = 1e-5        # nn.BatchNorm1d default eps
LANE = 128
HEAD_WIDTH = 8       # fused reg(1) + cls(3) head, zero-padded to 8 output lanes


def _round_up(n: int, m: int) -> int:
    return ((n + m - 1) // m) * m


def _pad2d(a, rows: int, cols: int):
    return jnp.pad(a, ((0, rows - a.shape[0]), (0, cols - a.shape[1])))


# ----------------------------------------------------------------------------
# Kernel
# ----------------------------------------------------------------------------
def make_hybridnet_kernel(num_layers: int):
    """Ref order: x, W_0..W_{L-1}, b_stack(L,128), W_head, b_head, out."""

    def kernel(*refs):
        x_ref = refs[0]
        w_refs = refs[1:1 + num_layers]
        b_stack_ref = refs[1 + num_layers]
        w_head_ref = refs[2 + num_layers]
        b_head_ref = refs[3 + num_layers]
        out_ref = refs[4 + num_layers]

        b_all = b_stack_ref[...]                      # (num_layers, feat_pad)

        h = x_ref[...]
        for i in range(num_layers):
            # Linear (input layer + BN already folded into W_i / b_i)
            h = jnp.dot(h, w_refs[i][...], preferred_element_type=jnp.float32)
            h = h + b_all[i:i + 1, :]
            h = jnp.maximum(h, LEAKY_SLOPE * h)       # LeakyReLU as single vmax
            # TODO(synk): Dropout is identity (eval mode); train-mode stochastic
            # dropout and batch-statistics BatchNorm are not reproduced.

        # fused regression + classification head, 8-lane output
        out_ref[...] = (
            jnp.dot(h, w_head_ref[...], preferred_element_type=jnp.float32)
            + b_head_ref[...]
        )

    return kernel


# ----------------------------------------------------------------------------
# Parameter init (deterministic).  Weights stored as [in, out].
# ----------------------------------------------------------------------------
def init_params(key, input_size: int, hidden_dim: int, num_layers: int):
    params = {}
    k = key

    def nrm(kk, shape, scale=0.1):
        return (scale * jax.random.normal(kk, shape)).astype(jnp.float32)

    k, sub = jax.random.split(k)
    params["w_in"] = nrm(sub, (input_size, hidden_dim))
    k, sub = jax.random.split(k)
    params["b_in"] = nrm(sub, (1, hidden_dim))

    layers = []
    for i in range(num_layers):
        din = int(hidden_dim / 2 ** i)
        dout = int(hidden_dim / 2 ** (i + 1))
        k, kw, kb, kg, kbeta, km, kv = jax.random.split(k, 7)
        layers.append(dict(
            w=nrm(kw, (din, dout)),
            b=nrm(kb, (1, dout)),
            gamma=(1.0 + 0.1 * jax.random.normal(kg, (1, dout))).astype(jnp.float32),
            beta=nrm(kbeta, (1, dout)),
            mean=nrm(km, (1, dout)),
            var=(1.0 + 0.1 * jax.random.uniform(kv, (1, dout))).astype(jnp.float32),
        ))
    params["layers"] = layers

    dlast = int(hidden_dim / 2 ** num_layers)
    k, kw, kb = jax.random.split(k, 3)
    params["w_reg"] = nrm(kw, (dlast, 1))
    params["b_reg"] = nrm(kb, (1, 1))
    k, kw, kb = jax.random.split(k, 3)
    params["w_cls"] = nrm(kw, (dlast, 3))
    params["b_cls"] = nrm(kb, (1, 3))
    return params


# ----------------------------------------------------------------------------
# Wrapper-side precompute: BN fold, input-layer fold, head fusion, padding
# ----------------------------------------------------------------------------
def fold_and_pack_params(params):
    """Returns (weights_list, bias_stack, w_head, b_head), padded for the kernel."""
    # 1) BN-fold each hidden layer:  w' = w*inv,  b' = (b - mean)*inv + beta
    folded = []
    for layer in params["layers"]:
        inv = layer["gamma"] * jax.lax.rsqrt(layer["var"] + BN_EPS)      # (1, dout)
        w_f = layer["w"] * inv
        b_f = (layer["b"] - layer["mean"]) * inv + layer["beta"]
        folded.append((w_f, b_f))

    # 2) Fold the activation-free input Linear into the first hidden layer.
    w0, b0 = folded[0]
    w_comb = params["w_in"] @ w0                     # (input_size, dout0)
    b_comb = params["b_in"] @ w0 + b0                # (1, dout0)
    folded[0] = (w_comb, b_comb)

    # 3) Pad every hidden feature dim to one common lane-aligned width.
    feat_pad = _round_up(max(w.shape[1] for w, _ in folded), LANE)

    weights, biases = [], []
    for i, (w, b) in enumerate(folded):
        rows = w.shape[0] if i == 0 else feat_pad    # first layer keeps input_size rows
        weights.append(_pad2d(w, rows, feat_pad))
        biases.append(_pad2d(b, 1, feat_pad))
    b_stack = jnp.concatenate(biases, axis=0)        # (num_layers, feat_pad)

    # 4) Fused head [reg | cls], padded to 8 output lanes.
    w_head = jnp.concatenate([params["w_reg"], params["w_cls"]], axis=1)  # (dlast, 4)
    b_head = jnp.concatenate([params["b_reg"], params["b_cls"]], axis=1)  # (1, 4)
    w_head = _pad2d(w_head, feat_pad, HEAD_WIDTH)
    b_head = _pad2d(b_head, 1, HEAD_WIDTH)
    return weights, b_stack, w_head, b_head


def hybridnet_forward(x, params, num_layers: int, batch_tile: int = 512):
    assert num_layers >= 1, "kernel assumes at least one hidden layer"
    batch, input_size = x.shape
    weights, b_stack, w_head, b_head = fold_and_pack_params(params)

    # Batch tile: as large as practical (amortize ~0.35us/grid-step), but keep
    # the grid >= 2 when the batch allows so both v7x TensorCores get work.
    half = _round_up(max(pl.cdiv(batch, 2), 1), 8)
    tb = max(8, min(batch_tile, half))
    padded_batch = _round_up(batch, tb)
    if padded_batch != batch:
        x = jnp.pad(x, ((0, padded_batch - batch), (0, 0)))
    grid = (padded_batch // tb,)

    param_args = list(weights) + [b_stack, w_head, b_head]

    in_specs = [pl.BlockSpec((tb, input_size), lambda i: (i, 0))]
    for p in param_args:
        # full-array block, constant index -> stays VMEM-resident across steps
        in_specs.append(pl.BlockSpec(p.shape, lambda i: (0, 0)))
    out_spec = pl.BlockSpec((tb, HEAD_WIDTH), lambda i: (i, 0))

    out = pl.pallas_call(
        make_hybridnet_kernel(num_layers),
        out_shape=jax.ShapeDtypeStruct((padded_batch, HEAD_WIDTH), jnp.float32),
        grid_spec=pltpu.PrefetchScalarGridSpec(
            num_scalar_prefetch=0,
            grid=grid,
            in_specs=in_specs,
            out_specs=out_spec,
        ),
        compiler_params=pltpu.CompilerParams(
            dimension_semantics=("parallel",),
        ),
    )(x, *param_args)

    out = out[:batch]
    return out[:, :1], out[:, 1:4]


# ----------------------------------------------------------------------------
# Pure-JAX reference (eval-mode module semantics, unfolded / unpadded)
# ----------------------------------------------------------------------------
def reference_forward(x, params, num_layers: int):
    h = x @ params["w_in"] + params["b_in"]
    for layer in params["layers"]:
        h = h @ layer["w"] + layer["b"]
        h = (h - layer["mean"]) / jnp.sqrt(layer["var"] + BN_EPS) * layer["gamma"] + layer["beta"]
        h = jnp.where(h >= 0.0, h, LEAKY_SLOPE * h)
    reg = h @ params["w_reg"] + params["b_reg"]
    cls = h @ params["w_cls"] + params["b_cls"]
    return reg, cls


if __name__ == "__main__":
    INPUT_SIZE = 16
    HIDDEN_DIM = 32
    NUM_LAYERS = 2
    BATCH = 256          # -> tb=128, grid=(2,): exercises the pipeline / both v7x TCs

    key = jax.random.PRNGKey(0)
    kx, kp = jax.random.split(key)
    x = jax.random.normal(kx, (BATCH, INPUT_SIZE), dtype=jnp.float32)
    params = init_params(kp, INPUT_SIZE, HIDDEN_DIM, NUM_LAYERS)

    reg_out, cls_out = hybridnet_forward(x, params, NUM_LAYERS)
    reg_out = jax.block_until_ready(reg_out)
    cls_out = jax.block_until_ready(cls_out)

    reg_ref, cls_ref = reference_forward(x, params, NUM_LAYERS)
    assert reg_out.shape == (BATCH, 1) and cls_out.shape == (BATCH, 3)
    assert jnp.allclose(reg_out, reg_ref, atol=3e-4, rtol=3e-4)
    assert jnp.allclose(cls_out, cls_ref, atol=3e-4, rtol=3e-4)

    print("KERNEL_OK")
</pallas_src>

<mosaic_0001>
module attributes {stable_mosaic.version = 11 : i64} {
  func.func @kernel(%arg0: i32, %arg1: memref<128x16xf32, #tpu.memory_space<vmem>>, %arg2: memref<16x128xf32, #tpu.memory_space<vmem>>, %arg3: memref<128x128xf32, #tpu.memory_space<vmem>>, %arg4: memref<2x128xf32, #tpu.memory_space<vmem>>, %arg5: memref<128x8xf32, #tpu.memory_space<vmem>>, %arg6: memref<1x8xf32, #tpu.memory_space<vmem>>, %arg7: memref<128x8xf32, #tpu.memory_space<vmem>>) attributes {dimension_semantics = [#tpu.dimension_semantics<parallel>], iteration_bounds = array<i64: 2>, scalar_prefetch = 0 : i64, scratch_operands = 0 : i64, tpu.core_type = #tpu.core_type<tc>, window_params = [{transform_indices = @transform_0, window_bounds = array<i64: 128, 16>}, {pipeline_mode = #tpu.pipeline_mode<synchronous>, transform_indices = @transform_1, window_bounds = array<i64: 16, 128>}, {pipeline_mode = #tpu.pipeline_mode<synchronous>, transform_indices = @transform_2, window_bounds = array<i64: 128, 128>}, {pipeline_mode = #tpu.pipeline_mode<synchronous>, transform_indices = @transform_3, window_bounds = array<i64: 2, 128>}, {pipeline_mode = #tpu.pipeline_mode<synchronous>, transform_indices = @transform_4, window_bounds = array<i64: 128, 8>}, {pipeline_mode = #tpu.pipeline_mode<synchronous>, transform_indices = @transform_5, window_bounds = array<i64: 1, 8>}, {transform_indices = @transform_6, window_bounds = array<i64: 128, 8>}]} {
    %c0 = arith.constant 0 : index
    %c0_0 = arith.constant 0 : index
    %0 = vector.load %arg4[%c0, %c0_0] : memref<2x128xf32, #tpu.memory_space<vmem>>, vector<2x128xf32>
    %c0_1 = arith.constant 0 : index
    %c0_2 = arith.constant 0 : index
    %1 = vector.load %arg1[%c0_1, %c0_2] : memref<128x16xf32, #tpu.memory_space<vmem>>, vector<128x16xf32>
    %c0_3 = arith.constant 0 : index
    %c0_4 = arith.constant 0 : index
    %2 = vector.load %arg2[%c0_3, %c0_4] : memref<16x128xf32, #tpu.memory_space<vmem>>, vector<16x128xf32>
    %cst = arith.constant dense<0.000000e+00> : vector<128x128xf32>
    %3 = tpu.matmul %1, %2, %cst {dimension_numbers = #tpu.dot_dimension_numbers<[1], [0], [0], [1], [0, 0, 1, 1], [], []>} : vector<128x16xf32>, vector<16x128xf32>, vector<128x128xf32> -> vector<128x128xf32>
    %4 = vector.extract_strided_slice %0 {offsets = [0, 0], sizes = [1, 128], strides = [1, 1]} : vector<2x128xf32> to vector<1x128xf32>
    %5 = vector.broadcast %4 : vector<1x128xf32> to vector<128x128xf32>
    %6 = arith.addf %3, %5 : vector<128x128xf32>
    %cst_5 = arith.constant 0.00999999977 : f32
    %7 = vector.broadcast %cst_5 : f32 to vector<128x128xf32>
    %8 = arith.mulf %7, %6 : vector<128x128xf32>
    %9 = arith.maximumf %6, %8 : vector<128x128xf32>
    %c0_6 = arith.constant 0 : index
    %c0_7 = arith.constant 0 : index
    %10 = vector.load %arg3[%c0_6, %c0_7] : memref<128x128xf32, #tpu.memory_space<vmem>>, vector<128x128xf32>
    %cst_8 = arith.constant dense<0.000000e+00> : vector<128x128xf32>
    %11 = tpu.matmul %9, %10, %cst_8 {dimension_numbers = #tpu.dot_dimension_numbers<[1], [0], [0], [1], [0, 0, 1, 1], [], []>} : vector<128x128xf32>, vector<128x128xf32>, vector<128x128xf32> -> vector<128x128xf32>
    %12 = vector.extract_strided_slice %0 {offsets = [1, 0], sizes = [1, 128], strides = [1, 1]} : vector<2x128xf32> to vector<1x128xf32>
    %13 = vector.broadcast %12 : vector<1x128xf32> to vector<128x128xf32>
    %14 = arith.addf %11, %13 : vector<128x128xf32>
    %cst_9 = arith.constant 0.00999999977 : f32
    %15 = vector.broadcast %cst_9 : f32 to vector<128x128xf32>
    %16 = arith.mulf %15, %14 : vector<128x128xf32>
    %17 = arith.maximumf %14, %16 : vector<128x128xf32>
    %c0_10 = arith.constant 0 : index
    %c0_11 = arith.constant 0 : index
    %18 = vector.load %arg5[%c0_10, %c0_11] : memref<128x8xf32, #tpu.memory_space<vmem>>, vector<128x8xf32>
    %cst_12 = arith.constant dense<0.000000e+00> : vector<128x8xf32>
    %19 = tpu.matmul %17, %18, %cst_12 {dimension_numbers = #tpu.dot_dimension_numbers<[1], [0], [0], [1], [0, 0, 1, 1], [], []>} : vector<128x128xf32>, vector<128x8xf32>, vector<128x8xf32> -> vector<128x8xf32>
    %c0_13 = arith.constant 0 : index
    %c0_14 = arith.constant 0 : index
    %20 = vector.load %arg6[%c0_13, %c0_14] : memref<1x8xf32, #tpu.memory_space<vmem>>, vector<1x8xf32>
    %21 = vector.broadcast %20 : vector<1x8xf32> to vector<128x8xf32>
    %22 = arith.addf %19, %21 : vector<128x8xf32>
    %c0_15 = arith.constant 0 : index
    %c0_16 = arith.constant 0 : index
    %23 = vector.load %arg7[%c0_15, %c0_16] : memref<128x8xf32, #tpu.memory_space<vmem>>, vector<128x8xf32>
    tpu.vector_store %arg7[%c0_15, %c0_16], %22 {strides = array<i32>} : memref<128x8xf32, #tpu.memory_space<vmem>>, vector<128x8xf32>,
    return
  }
  func.func @transform_0(%arg0: i32) -> (i32, i32) {
    %c0_i32 = arith.constant 0 : i32
    %c0_i32_0 = arith.constant 0 : i32
    return %arg0, %c0_i32 : i32, i32
  }
  func.func @transform_1(%arg0: i32) -> (i32, i32) {
    %c0_i32 = arith.constant 0 : i32
    %c0_i32_0 = arith.constant 0 : i32
    %c0_i32_1 = arith.constant 0 : i32
    return %c0_i32, %c0_i32_0 : i32, i32
  }
  func.func @transform_2(%arg0: i32) -> (i32, i32) {
    %c0_i32 = arith.constant 0 : i32
    %c0_i32_0 = arith.constant 0 : i32
    %c0_i32_1 = arith.constant 0 : i32
    return %c0_i32, %c0_i32_0 : i32, i32
  }
  func.func @transform_3(%arg0: i32) -> (i32, i32) {
    %c0_i32 = arith.constant 0 : i32
    %c0_i32_0 = arith.constant 0 : i32
    %c0_i32_1 = arith.constant 0 : i32
    return %c0_i32, %c0_i32_0 : i32, i32
  }
  func.func @transform_4(%arg0: i32) -> (i32, i32) {
    %c0_i32 = arith.constant 0 : i32
    %c0_i32_0 = arith.constant 0 : i32
    %c0_i32_1 = arith.constant 0 : i32
    return %c0_i32, %c0_i32_0 : i32, i32
  }
  func.func @transform_5(%arg0: i32) -> (i32, i32) {
    %c0_i32 = arith.constant 0 : i32
    %c0_i32_0 = arith.constant 0 : i32
    %c0_i32_1 = arith.constant 0 : i32
    return %c0_i32, %c0_i32_0 : i32, i32
  }
  func.func @transform_6(%arg0: i32) -> (i32, i32) {
    %c0_i32 = arith.constant 0 : i32
    %c0_i32_0 = arith.constant 0 : i32
    return %arg0, %c0_i32 : i32, i32
  }
}

</mosaic_0001>

<llo_original>
// kernel: tpu_custom_call.1
$region0: #{tpu_custom_call.1}
  #allocation0 [shape = 'u32[]', space=smem, size = 0x4, offset = 0x4, fixed_abs, tag = 'smem constant byte address 0x4 - core index']
  #allocation1 [shape = 'u32[144,128]{1,0:T(1,128)}', space=vmem, size = 0x12000, scoped, tag = 'internal scratch']
  %s0 = inlined_call_operand.vmem [shape: f32[256,16], index: 0, kind: input, shape index: {}]
  %s1 = inlined_call_operand.vmem [shape: f32[16,128], index: 1, kind: input, shape index: {}]
  %s2 = inlined_call_operand.vmem [shape: f32[128,128], index: 2, kind: input, shape index: {}]
  %s3 = inlined_call_operand.vmem [shape: f32[2,128], index: 3, kind: input, shape index: {}]
  %s4 = inlined_call_operand.vmem [shape: f32[128,8], index: 4, kind: input, shape index: {}]
  %s5 = inlined_call_operand.vmem [shape: f32[1,8], index: 5, kind: input, shape index: {}]
  %s6 = inlined_call_operand.vmem [shape: f32[256,8], index: 6, kind: output, shape index: {}]
  %s7 = sld [smem:[#allocation0]]
  $region57: #{tpu_custom_call.1} parent=0
    _
  %s9 = ssub.s32 1, %s7
  %s10 = scalar_select 0, %s9, %s7
  loop: start=0, step=1, limit=4
  $region2: #{tpu_custom_call.1} parent=0 // loop_pre_header
    _
  $region3: #{tpu_custom_call.1} parent=0 // loop_header
    %s12 = sphi 0, %s16
    %p13 = scmp.ge.s32.totalorder %s12, 4
    %s22 = sphi 0, %s24
    %s25 = sphi 0, %s22
    %s26 = sphi 0, %s25
    %s42 = sphi 0, %s26
    %s46 = sphi 0, %s46
    %s48 = sphi 0, %s46
    %s49 = sphi 0, %s48
    %s63 = sphi 0, %s49
    %s67 = sphi 0, %s67
    %s69 = sphi 0, %s67
    %s70 = sphi 0, %s69
    %s84 = sphi 0, %s70
    %s88 = sphi 0, %s88
    %s90 = sphi 0, %s88
    %s91 = sphi 0, %s90
    %s105 = sphi 0, %s91
    %s109 = sphi 0, %s109
    %s111 = sphi 0, %s109
    %s112 = sphi 0, %s111
    %s126 = sphi 0, %s112
    %s130 = sphi 0, %s130
    %s132 = sphi 0, %s130
    %s133 = sphi 0, %s132
    %s147 = sphi 0, %s133
    %s153 = sphi 0, %s155
    %s156 = sphi 0, %s153
    %s157 = sphi 0, %s156
    %s173 = sphi 0, %s157
  $region4: #{tpu_custom_call.1} parent=0 // loop_header_branch
    %15 = sbr.rel (%p13) target = $region8
  $region5: #{tpu_custom_call.1} parent=0 // loop_body
    %s17 = ssub.s32 %s12, 1
    %s18 = ssub.s32 %s12, 2
    %s19 = sadd.s32 %s12, 1
    %s20 = ssub.s32 %s12, %s19
    %p21 = scmp.eq.s32.totalorder %s20, 0
    %s23 = sadd.s32 %s22, 1
    %s24 = scalar_select %p21, %s22, %s23
    %p27 = pneg %p21
    %p28 = scmp.eq.s32.totalorder %s12, 1
    %p29 = por %p27, %p28
    %p30 = scmp.ne.s32.totalorder %s22, %s25
    %p31 = scmp.eq.s32.totalorder %s12, 0
    %p32 = por %p30, %p31
    %p33 = scmp.ne.s32.totalorder %s22, %s25
    %p34 = scmp.eq.s32.totalorder %s17, 1
    %p35 = por %p33, %p34
    %p36 = scmp.ne.s32.totalorder %s25, %s26
    %p37 = scmp.eq.s32.totalorder %s17, 0
    %p38 = por %p36, %p37
    %p39 = scmp.ne.s32.totalorder %s25, %s26
    %p40 = scmp.eq.s32.totalorder %s18, 1
    %p41 = por %p39, %p40
    %p43 = scmp.ne.s32.totalorder %s26, %s42
    %p44 = scmp.eq.s32.totalorder %s18, 0
    %p45 = por %p43, %p44
    %s47 = sadd.s32 %s46, 1
    %p50 = scmp.eq.s32.totalorder %s12, 1
    %p51 = scmp.ne.s32.totalorder %s46, %s48
    %p52 = scmp.eq.s32.totalorder %s12, 0
    %p53 = por %p51, %p52
    %p54 = scmp.ne.s32.totalorder %s46, %s48
    %p55 = scmp.eq.s32.totalorder %s17, 1
    %p56 = por %p54, %p55
    %p57 = scmp.ne.s32.totalorder %s48, %s49
    %p58 = scmp.eq.s32.totalorder %s17, 0
    %p59 = por %p57, %p58
    %p60 = scmp.ne.s32.totalorder %s48, %s49
    %p61 = scmp.eq.s32.totalorder %s18, 1
    %p62 = por %p60, %p61
    %p64 = scmp.ne.s32.totalorder %s49, %s63
    %p65 = scmp.eq.s32.totalorder %s18, 0
    %p66 = por %p64, %p65
    %s68 = sadd.s32 %s67, 1
    %p71 = scmp.eq.s32.totalorder %s12, 1
    %p72 = scmp.ne.s32.totalorder %s67, %s69
    %p73 = scmp.eq.s32.totalorder %s12, 0
    %p74 = por %p72, %p73
    %p75 = scmp.ne.s32.totalorder %s67, %s69
    %p76 = scmp.eq.s32.totalorder %s17, 1
    %p77 = por %p75, %p76
    %p78 = scmp.ne.s32.totalorder %s69, %s70
    %p79 = scmp.eq.s32.totalorder %s17, 0
    %p80 = por %p78, %p79
    %p81 = scmp.ne.s32.totalorder %s69, %s70
    %p82 = scmp.eq.s32.totalorder %s18, 1
    %p83 = por %p81, %p82
    %p85 = scmp.ne.s32.totalorder %s70, %s84
    %p86 = scmp.eq.s32.totalorder %s18, 0
    %p87 = por %p85, %p86
    %s89 = sadd.s32 %s88, 1
    %p92 = scmp.eq.s32.totalorder %s12, 1
    %p93 = scmp.ne.s32.totalorder %s88, %s90
    %p94 = scmp.eq.s32.totalorder %s12, 0
    %p95 = por %p93, %p94
    %p96 = scmp.ne.s32.totalorder %s88, %s90
    %p97 = scmp.eq.s32.totalorder %s17, 1
    %p98 = por %p96, %p97
    %p99 = scmp.ne.s32.totalorder %s90, %s91
    %p100 = scmp.eq.s32.totalorder %s17, 0
    %p101 = por %p99, %p100
    %p102 = scmp.ne.s32.totalorder %s90, %s91
    %p103 = scmp.eq.s32.totalorder %s18, 1
    %p104 = por %p102, %p103
    %p106 = scmp.ne.s32.totalorder %s91, %s105
    %p107 = scmp.eq.s32.totalorder %s18, 0
    %p108 = por %p106, %p107
    %s110 = sadd.s32 %s109, 1
    %p113 = scmp.eq.s32.totalorder %s12, 1
    %p114 = scmp.ne.s32.totalorder %s109, %s111
    %p115 = scmp.eq.s32.totalorder %s12, 0
    %p116 = por %p114, %p115
    %p117 = scmp.ne.s32.totalorder %s109, %s111
    %p118 = scmp.eq.s32.totalorder %s17, 1
    %p119 = por %p117, %p118
    %p120 = scmp.ne.s32.totalorder %s111, %s112
    %p121 = scmp.eq.s32.totalorder %s17, 0
    %p122 = por %p120, %p121
    %p123 = scmp.ne.s32.totalorder %s111, %s112
    %p124 = scmp.eq.s32.totalorder %s18, 1
    %p125 = por %p123, %p124
    %p127 = scmp.ne.s32.totalorder %s112, %s126
    %p128 = scmp.eq.s32.totalorder %s18, 0
    %p129 = por %p127, %p128
    %s131 = sadd.s32 %s130, 1
    %p134 = scmp.eq.s32.totalorder %s12, 1
    %p135 = scmp.ne.s32.totalorder %s130, %s132
    %p136 = scmp.eq.s32.totalorder %s12, 0
    %p137 = por %p135, %p136
    %p138 = scmp.ne.s32.totalorder %s130, %s132
    %p139 = scmp.eq.s32.totalorder %s17, 1
    %p140 = por %p138, %p139
    %p141 = scmp.ne.s32.totalorder %s132, %s133
    %p142 = scmp.eq.s32.totalorder %s17, 0
    %p143 = por %p141, %p142
    %p144 = scmp.ne.s32.totalorder %s132, %s133
    %p145 = scmp.eq.s32.totalorder %s18, 1
    %p146 = por %p144, %p145
    %p148 = scmp.ne.s32.totalorder %s133, %s147
    %p149 = scmp.eq.s32.totalorder %s18, 0
    %p150 = por %p148, %p149
    %s151 = ssub.s32 %s12, %s19
    %p152 = scmp.eq.s32.totalorder %s151, 0
    %s154 = sadd.s32 %s153, 1
    %s155 = scalar_select %p152, %s153, %s154
    %p158 = pneg %p152
    %p159 = scmp.eq.s32.totalorder %s12, 1
    %p160 = por %p158, %p159
    %p161 = scmp.ne.s32.totalorder %s153, %s156
    %p162 = scmp.eq.s32.totalorder %s12, 0
    %p163 = por %p161, %p162
    %p164 = scmp.ne.s32.totalorder %s153, %s156
    %p165 = scmp.eq.s32.totalorder %s17, 1
    %p166 = por %p164, %p165
    %p167 = scmp.ne.s32.totalorder %s156, %s157
    %p168 = scmp.eq.s32.totalorder %s17, 0
    %p169 = por %p167, %p168
    %p170 = scmp.ne.s32.totalorder %s156, %s157
    %p171 = scmp.eq.s32.totalorder %s18, 1
    %p172 = por %p170, %p171
    %p174 = scmp.ne.s32.totalorder %s157, %s173
    %p175 = scmp.eq.s32.totalorder %s18, 0
    %p176 = por %p174, %p175
    %p177 = scmp.le.s32.totalorder 1, %s12
    %p178 = scmp.lt.s32.totalorder %s12, 3
    %p179 = pnand %p177, %p178
    %p180 = pneg %p179
    // Predicated region
    $region9: #{tpu_custom_call.1} parent=5 // pred_check
      _
    $region10: #{tpu_custom_call.1} parent=5 // pred_check_branch
      %182 = sbr.rel (%p179) target = $region12
    $region11: #{tpu_custom_call.1} parent=5 // pred_region
      %s183 = ssub.s32 %s12, 1
      // Predicated region
      $region13: #{tpu_custom_call.1} parent=11 // pred_check
        %p184 = pneg %p59
      $region14: #{tpu_custom_call.1} parent=11 // pred_check_branch
        %186 = sbr.rel (%p184) target = $region16
      $region15: #{tpu_custom_call.1} parent=11 // pred_region
        _
      $region16: #{tpu_custom_call.1} parent=11 // pred_fallthru
        _
      // Predicated region
      $region17: #{tpu_custom_call.1} parent=11 // pred_check
        %p187 = pneg %p80
      $region18: #{tpu_custom_call.1} parent=11 // pred_check_branch
        %189 = sbr.rel (%p187) target = $region20
      $region19: #{tpu_custom_call.1} parent=11 // pred_region
        _
      $region20: #{tpu_custom_call.1} parent=11 // pred_fallthru
        _
      // Predicated region
      $region21: #{tpu_custom_call.1} parent=11 // pred_check
        %p190 = pneg %p101
      $region22: #{tpu_custom_call.1} parent=11 // pred_check_branch
        %192 = sbr.rel (%p190) target = $region24
      $region23: #{tpu_custom_call.1} parent=11 // pred_region
        _
      $region24: #{tpu_custom_call.1} parent=11 // pred_fallthru
        _
      // Predicated region
      $region25: #{tpu_custom_call.1} parent=11 // pred_check
        %p193 = pneg %p122
      $region26: #{tpu_custom_call.1} parent=11 // pred_check_branch
        %195 = sbr.rel (%p193) target = $region28
      $region27: #{tpu_custom_call.1} parent=11 // pred_region
        _
      $region28: #{tpu_custom_call.1} parent=11 // pred_fallthru
        _
      // Predicated region
      $region29: #{tpu_custom_call.1} parent=11 // pred_check
        %p196 = pneg %p143
      $region30: #{tpu_custom_call.1} parent=11 // pred_check_branch
        %198 = sbr.rel (%p196) target = $region32
      $region31: #{tpu_custom_call.1} parent=11 // pred_region
        _
      $region32: #{tpu_custom_call.1} parent=11 // pred_fallthru
        _
    $region12: #{tpu_custom_call.1} parent=5 // pred_fallthru
      _
    %p199 = scmp.lt.s32.totalorder %s12, 2
    // Predicated region
    $region33: #{tpu_custom_call.1} parent=5 // pred_check
      %p200 = pneg %p199
    $region34: #{tpu_custom_call.1} parent=5 // pred_check_branch
      %202 = sbr.rel (%p200) target = $region36
    $region35: #{tpu_custom_call.1} parent=5 // pred_region
      // Predicated region
      $region37: #{tpu_custom_call.1} parent=35 // pred_check
        %p203 = pneg %p32
      $region38: #{tpu_custom_call.1} parent=35 // pred_check_branch
        %205 = sbr.rel (%p203) target = $region40
      $region39: #{tpu_custom_call.1} parent=35 // pred_region
        %s206 = smul.u32 16, %s12
        %p207 = scmp.lt.s32.totalorder %s206, 31
        %s208 = scalar_select %p207, %s206, 31
        %s209 = smul.addr %s208, 8
        %s210 = scalar_lea.vmem %s0, %s209
        %s211 = smul.u32 16, %s12
      $region40: #{tpu_custom_call.1} parent=35 // pred_fallthru
        _
    $region36: #{tpu_custom_call.1} parent=5 // pred_fallthru
      _
    %p212 = scmp.le.s32.totalorder 1, %s12
    %p213 = scmp.lt.s32.totalorder %s12, 3
    %p214 = pnand %p212, %p213
    %p215 = pneg %p214
    // Predicated region
    $region41: #{tpu_custom_call.1} parent=5 // pred_check
      _
    $region42: #{tpu_custom_call.1} parent=5 // pred_check_branch
      %217 = sbr.rel (%p214) target = $region44
    $region43: #{tpu_custom_call.1} parent=5 // pred_region
      %s218 = ssub.s32 %s12, 1
      %s219 = smul.u32 16, %s17
      %p220 = scmp.lt.s32.totalorder %s219, 31
      %s221 = scalar_select %p220, %s219, 31
      %s222 = smul.addr %s221, 8
      %s223 = scalar_lea.vmem %s0, %s222
      %p224 = pneg %p38
      %p225 = pneg %p35
      %p226 = pneg %p59
      %p227 = pneg %p56
      %p228 = pneg %p80
      %p229 = pneg %p77
      %p230 = pneg %p101
      %p231 = pneg %p98
      %p232 = pneg %p122
      %p233 = pneg %p119
      %p234 = pneg %p143
      %p235 = pneg %p140
      %p236 = pneg %p169
      %p237 = pneg %p166
      %s238 = smul.u32 16, %s17
      %p239 = scmp.lt.s32.totalorder %s238, 31
      %s240 = scalar_select %p239, %s238, 31
      %s241 = smul.addr %s240, 8
      %s242 = scalar_lea.vmem %s6, %s241
      %s243 = smul.u32 16, %s17
      %p244 = scmp.lt.s32.totalorder %s243, 31
      %s245 = scalar_select %p244, %s243, 31
      %s246 = smul.addr %s245, 8
      %s247 = scalar_lea.vmem %s0, %s246
      %s248 = smul.u32 16, %s17
      %s249 = smul.u32 16, %s17
      %p250 = scmp.lt.s32.totalorder %s249, 31
      %s251 = scalar_select %p250, %s249, 31
      %s252 = smul.addr %s251, 8
      %s253 = scalar_lea.vmem %s6, %s252
      %s254 = smul.u32 16, %s17
      %v255 = vld [vmem:[%s3] sm:$0x3]
      %v256 = vld [vmem:[%s247] sm:$0xff]
      %v257 = vld [vmem:[%s247 + $0x8] sm:$0xff]
      %v258 = vld [vmem:[%s247 + $0x10] sm:$0xff]
      %v259 = vld [vmem:[%s247 + $0x18] sm:$0xff]
      %v260 = vld [vmem:[%s247 + $0x20] sm:$0xff]
      %v261 = vld [vmem:[%s247 + $0x28] sm:$0xff]
      %v262 = vld [vmem:[%s247 + $0x30] sm:$0xff]
      %v263 = vld [vmem:[%s247 + $0x38] sm:$0xff]
      %v264 = vld [vmem:[%s247 + $0x40] sm:$0xff]
      %v265 = vld [vmem:[%s247 + $0x48] sm:$0xff]
      %v266 = vld [vmem:[%s247 + $0x50] sm:$0xff]
      %v267 = vld [vmem:[%s247 + $0x58] sm:$0xff]
      %v268 = vld [vmem:[%s247 + $0x60] sm:$0xff]
      %v269 = vld [vmem:[%s247 + $0x68] sm:$0xff]
      %v270 = vld [vmem:[%s247 + $0x70] sm:$0xff]
      %v271 = vld [vmem:[%s247 + $0x78] sm:$0xff]
      %v272 = vld [vmem:[%s1] sm:$0xff]
      %v273 = vld [vmem:[%s1 + $0x8] sm:$0xff]
      %v274 = vlaneseq
      %v275 = vshrl.u32 %v274, 7
      %v276 = vsub.s32 0, %v275
      %v277 = vrot.slane %v255, %v276
      %vm278 = vcmask 130048
      %v280 = vsel %vm278, %v256, 0
      %v283 = vsel %vm278, %v257, 0
      %v286 = vsel %vm278, %v258, 0
      %v289 = vsel %vm278, %v259, 0
      %v292 = vsel %vm278, %v260, 0
      %v295 = vsel %vm278, %v261, 0
      %v298 = vsel %vm278, %v262, 0
      %v301 = vsel %vm278, %v263, 0
      %v304 = vsel %vm278, %v264, 0
      %v307 = vsel %vm278, %v265, 0
      %v310 = vsel %vm278, %v266, 0
      %v313 = vsel %vm278, %v267, 0
      %v316 = vsel %vm278, %v268, 0
      %v319 = vsel %vm278, %v269, 0
      %v322 = vsel %vm278, %v270, 0
      %v325 = vsel %vm278, %v271, 0
      %327 = vmatprep.subr.mxu0 0.0
      %328 = vmatpush1.msra.mxu0 0.0
      %329 = vmatprep.subr.mxu0 0.0
      %330 = vmatpush1.msra.mxu0 0.0
      %331 = vmatprep.subr.mxu0 0.0
      %332 = vmatpush1.msra.mxu0 0.0
      %333 = vmatprep.subr.mxu0 0.0
      %334 = vmatpush1.msra.mxu0 0.0
      %335 = vmatprep.subr.mxu0 0.0
      %336 = vmatpush1.msra.mxu0 0.0
      %337 = vmatprep.subr.mxu0 0.0
      %338 = vmatpush1.msra.mxu0 0.0
      %339 = vmatprep.subr.mxu0 0.0
      %340 = vmatpush1.msra.mxu0 0.0
      %341 = vmatprep.subr.mxu0 0.0
      %342 = vmatpush1.msra.mxu0 0.0
      %343 = vmatprep.subr.mxu0 0.0
      %344 = vmatpush1.msra.mxu0 0.0
      %345 = vmatprep.subr.mxu0 0.0
      %346 = vmatpush1.msra.mxu0 0.0
      %347 = vmatprep.subr.mxu0 0.0
      %348 = vmatpush1.msra.mxu0 0.0
      %349 = vmatprep.subr.mxu0 0.0
      %350 = vmatpush1.msra.mxu0 0.0
      %351 = vmatprep.subr.mxu0 0.0
      %352 = vmatpush1.msra.mxu0 0.0
      %353 = vmatprep.subr.mxu0 0.0
      %354 = vmatpush1.msra.mxu0 0.0
      %355 = vmatprep.subr.mxu0 0.0
      %356 = vmatpush1.msra.mxu0 %v273
      %357 = vmatprep.subr.mxu0 0.0
      %358 = vmatpush1.msra.mxu0 %v272
      %359 = vmatprep.subr.mxu0 0.0
      %360 = vmatpush2.msra.mxu0 0.0
      %361 = vmatprep.subr.mxu0 0.0
      %362 = vmatpush2.msra.mxu0 0.0
      %363 = vmatprep.subr.mxu0 0.0
      %364 = vmatpush2.msra.mxu0 0.0
      %365 = vmatprep.subr.mxu0 0.0
      %366 = vmatpush2.msra.mxu0 0.0
      %367 = vmatprep.subr.mxu0 0.0
      %368 = vmatpush2.msra.mxu0 0.0
      %369 = vmatprep.subr.mxu0 0.0
      %370 = vmatpush2.msra.mxu0 0.0
      %371 = vmatprep.subr.mxu0 0.0
      %372 = vmatpush2.msra.mxu0 0.0
      %373 = vmatprep.subr.mxu0 0.0
      %374 = vmatpush2.msra.mxu0 0.0
      %375 = vmatprep.subr.mxu0 0.0
      %376 = vmatpush2.msra.mxu0 0.0
      %377 = vmatprep.subr.mxu0 0.0
      %378 = vmatpush2.msra.mxu0 0.0
      %379 = vmatprep.subr.mxu0 0.0
      %380 = vmatpush2.msra.mxu0 0.0
      %381 = vmatprep.subr.mxu0 0.0
      %382 = vmatpush2.msra.mxu0 0.0
      %383 = vmatprep.subr.mxu0 0.0
      %384 = vmatpush2.msra.mxu0 0.0
      %385 = vmatprep.subr.mxu0 0.0
      %386 = vmatpush2.msra.mxu0 0.0
      %387 = vmatprep.subr.mxu0 0.0
      %388 = vmatpush2.msra.mxu0 0.0
      %389 = vmatprep.subr.mxu0 0.0
      %390 = vmatpush2.msra.mxu0 0.0
      %391 = vmatprep.mubr.f32.mxu0 0.0
      %392 = vmatmul.mubr.f32.gmra.mxu0 %v280
      %v393 = vpop.f32.mrf.mxu0
      %v394 = vadd.f32 %v277, %v393
      %v395 = vpop.f32.mrf.mxu0
      %396 = vmatprep.mubr.f32.mxu0 0.0
      %397 = vmatmul.mubr.f32.gmra.mxu0 %v283
      %v398 = vpop.f32.mrf.mxu0
      %v399 = vadd.f32 %v277, %v398
      %v400 = vpop.f32.mrf.mxu0
      %401 = vmatprep.mubr.f32.mxu0 0.0
      %402 = vmatmul.mubr.f32.gmra.mxu0 %v286
      %v403 = vpop.f32.mrf.mxu0
      %v404 = vadd.f32 %v277, %v403
      %v405 = vpop.f32.mrf.mxu0
      %406 = vmatprep.mubr.f32.mxu0 0.0
      %407 = vmatmul.mubr.f32.gmra.mxu0 %v289
      %v408 = vpop.f32.mrf.mxu0
      %v409 = vadd.f32 %v277, %v408
      %v410 = vpop.f32.mrf.mxu0
      %411 = vmatprep.mubr.f32.mxu0 0.0
      %412 = vmatmul.mubr.f32.gmra.mxu0 %v292
      %v413 = vpop.f32.mrf.mxu0
      %v414 = vadd.f32 %v277, %v413
      %v415 = vpop.f32.mrf.mxu0
      %416 = vmatprep.mubr.f32.mxu0 0.0
      %417 = vmatmul.mubr.f32.gmra.mxu0 %v295
      %v418 = vpop.f32.mrf.mxu0
      %v419 = vadd.f32 %v277, %v418
      %v420 = vpop.f32.mrf.mxu0
      %421 = vmatprep.mubr.f32.mxu0 0.0
      %422 = vmatmul.mubr.f32.gmra.mxu0 %v298
      %v423 = vpop.f32.mrf.mxu0
      %v424 = vadd.f32 %v277, %v423
      %v425 = vpop.f32.mrf.mxu0
      %426 = vmatprep.mubr.f32.mxu0 0.0
      %427 = vmatmul.mubr.f32.gmra.mxu0 %v301
      %v428 = vpop.f32.mrf.mxu0
      %v429 = vadd.f32 %v277, %v428
      %v430 = vpop.f32.mrf.mxu0
      %431 = vmatprep.mubr.f32.mxu0 0.0
      %432 = vmatmul.mubr.f32.gmra.mxu0 %v304
      %v433 = vpop.f32.mrf.mxu0
      %v434 = vadd.f32 %v277, %v433
      %v435 = vpop.f32.mrf.mxu0
      %436 = vmatprep.mubr.f32.mxu0 0.0
      %437 = vmatmul.mubr.f32.gmra.mxu0 %v307
      %v438 = vpop.f32.mrf.mxu0
      %v439 = vadd.f32 %v277, %v438
      %v440 = vpop.f32.mrf.mxu0
      %441 = vmatprep.mubr.f32.mxu0 0.0
      %442 = vmatmul.mubr.f32.gmra.mxu0 %v310
      %v443 = vpop.f32.mrf.mxu0
      %v444 = vadd.f32 %v277, %v443
      %v445 = vpop.f32.mrf.mxu0
      %446 = vmatprep.mubr.f32.mxu0 0.0
      %447 = vmatmul.mubr.f32.gmra.mxu0 %v313
      %v448 = vpop.f32.mrf.mxu0
      %v449 = vadd.f32 %v277, %v448
      %v450 = vpop.f32.mrf.mxu0
      %451 = vmatprep.mubr.f32.mxu0 0.0
      %452 = vmatmul.mubr.f32.gmra.mxu0 %v316
      %v453 = vpop.f32.mrf.mxu0
      %v454 = vadd.f32 %v277, %v453
      %v455 = vpop.f32.mrf.mxu0
      %456 = vmatprep.mubr.f32.mxu0 0.0
      %457 = vmatmul.mubr.f32.gmra.mxu0 %v319
      %v458 = vpop.f32.mrf.mxu0
      %v459 = vadd.f32 %v277, %v458
      %v460 = vpop.f32.mrf.mxu0
      %461 = vmatprep.mubr.f32.mxu0 0.0
      %462 = vmatmul.mubr.f32.gmra.mxu0 %v322
      %v463 = vpop.f32.mrf.mxu0
      %v464 = vadd.f32 %v277, %v463
      %v465 = vpop.f32.mrf.mxu0
      %466 = vmatprep.mubr.f32.mxu0 0.0
      %467 = vmatmul.mubr.f32.gmra.mxu0 %v325
      %v468 = vpop.f32.mrf.mxu0
      %v469 = vadd.f32 %v277, %v468
      %v470 = vpop.f32.mrf.mxu0
      %471 = vdwg.mxu0
      %v472 = vmul.f32 %v394, 0.01
      %v473 = vmul.f32 %v399, 0.01
      %v474 = vmul.f32 %v404, 0.01
      %v475 = vmul.f32 %v409, 0.01
      %v476 = vmul.f32 %v414, 0.01
      %v477 = vmul.f32 %v419, 0.01
      %v478 = vmul.f32 %v424, 0.01
      %v479 = vmul.f32 %v429, 0.01
      %v480 = vmul.f32 %v434, 0.01
      %v481 = vmul.f32 %v439, 0.01
      %v482 = vmul.f32 %v444, 0.01
      %v483 = vmul.f32 %v449, 0.01
      %v484 = vmul.f32 %v454, 0.01
      %v485 = vmul.f32 %v459, 0.01
      %v486 = vmul.f32 %v464, 0.01
      %v487 = vmul.f32 %v469, 0.01
      %v488 = vmax.f32 %v394, %v472
      %v489 = vmax.f32 %v399, %v473
      %v490 = vmax.f32 %v404, %v474
      %v491 = vmax.f32 %v409, %v475
      %v492 = vmax.f32 %v414, %v476
      %v493 = vmax.f32 %v419, %v477
      %v494 = vmax.f32 %v424, %v478
      %v495 = vmax.f32 %v429, %v479
      %v496 = vmax.f32 %v434, %v480
      %v497 = vmax.f32 %v439, %v481
      %v498 = vmax.f32 %v444, %v482
      %v499 = vmax.f32 %v449, %v483
      %v500 = vmax.f32 %v454, %v484
      %v501 = vmax.f32 %v459, %v485
      %v502 = vmax.f32 %v464, %v486
      %v503 = vmax.f32 %v469, %v487
      %v504 = vld [vmem:[%s2] sm:$0xff]
      %v505 = vld [vmem:[%s2 + $0x8] sm:$0xff]
      %v506 = vld [vmem:[%s2 + $0x10] sm:$0xff]
      %v507 = vld [vmem:[%s2 + $0x18] sm:$0xff]
      %v508 = vld [vmem:[%s2 + $0x20] sm:$0xff]
      %v509 = vld [vmem:[%s2 + $0x28] sm:$0xff]
      %v510 = vld [vmem:[%s2 + $0x30] sm:$0xff]
      %v511 = vld [vmem:[%s2 + $0x38] sm:$0xff]
      %v512 = vld [vmem:[%s2 + $0x40] sm:$0xff]
      %v513 = vld [vmem:[%s2 + $0x48] sm:$0xff]
      %v514 = vld [vmem:[%s2 + $0x50] sm:$0xff]
      %v515 = vld [vmem:[%s2 + $0x58] sm:$0xff]
      %v516 = vld [vmem:[%s2 + $0x60] sm:$0xff]
      %v517 = vld [vmem:[%s2 + $0x68] sm:$0xff]
      %v518 = vld [vmem:[%s2 + $0x70] sm:$0xff]
      %v519 = vld [vmem:[%s2 + $0x78] sm:$0xff]
      %v520 = vlaneseq
      %v521 = vshrl.u32 %v520, 7
      %v522 = vsub.s32 1, %v521
      %v523 = vrot.slane %v255, %v522
      %524 = vmatprep.subr.mxu0 0.0
      %525 = vmatpush1.msra.mxu0 %v519
      %526 = vmatprep.subr.mxu0 0.0
      %527 = vmatpush1.msra.mxu0 %v518
      %528 = vmatprep.subr.mxu0 0.0
      %529 = vmatpush1.msra.mxu0 %v517
      %530 = vmatprep.subr.mxu0 0.0
      %531 = vmatpush1.msra.mxu0 %v516
      %532 = vmatprep.subr.mxu0 0.0
      %533 = vmatpush1.msra.mxu0 %v515
      %534 = vmatprep.subr.mxu0 0.0
      %535 = vmatpush1.msra.mxu0 %v514
      %536 = vmatprep.subr.mxu0 0.0
      %537 = vmatpush1.msra.mxu0 %v513
      %538 = vmatprep.subr.mxu0 0.0
      %539 = vmatpush1.msra.mxu0 %v512
      %540 = vmatprep.subr.mxu0 0.0
      %541 = vmatpush1.msra.mxu0 %v511
      %542 = vmatprep.subr.mxu0 0.0
      %543 = vmatpush1.msra.mxu0 %v510
      %544 = vmatprep.subr.mxu0 0.0
      %545 = vmatpush1.msra.mxu0 %v509
      %546 = vmatprep.subr.mxu0 0.0
      %547 = vmatpush1.msra.mxu0 %v508
      %548 = vmatprep.subr.mxu0 0.0
      %549 = vmatpush1.msra.mxu0 %v507
      %550 = vmatprep.subr.mxu0 0.0
      %551 = vmatpush1.msra.mxu0 %v506
      %552 = vmatprep.subr.mxu0 0.0
      %553 = vmatpush1.msra.mxu0 %v505
      %554 = vmatprep.subr.mxu0 0.0
      %555 = vmatpush1.msra.mxu0 %v504
      %556 = vmatprep.subr.mxu0 0.0
      %557 = vmatpush2.msra.mxu0 0.0
      %558 = vmatprep.subr.mxu0 0.0
      %559 = vmatpush2.msra.mxu0 0.0
      %560 = vmatprep.subr.mxu0 0.0
      %561 = vmatpush2.msra.mxu0 0.0
      %562 = vmatprep.subr.mxu0 0.0
      %563 = vmatpush2.msra.mxu0 0.0
      %564 = vmatprep.subr.mxu0 0.0
      %565 = vmatpush2.msra.mxu0 0.0
      %566 = vmatprep.subr.mxu0 0.0
      %567 = vmatpush2.msra.mxu0 0.0
      %568 = vmatprep.subr.mxu0 0.0
      %569 = vmatpush2.msra.mxu0 0.0
      %570 = vmatprep.subr.mxu0 0.0
      %571 = vmatpush2.msra.mxu0 0.0
      %572 = vmatprep.subr.mxu0 0.0
      %573 = vmatpush2.msra.mxu0 0.0
      %574 = vmatprep.subr.mxu0 0.0
      %575 = vmatpush2.msra.mxu0 0.0
      %576 = vmatprep.subr.mxu0 0.0
      %577 = vmatpush2.msra.mxu0 0.0
      %578 = vmatprep.subr.mxu0 0.0
      %579 = vmatpush2.msra.mxu0 0.0
      %580 = vmatprep.subr.mxu0 0.0
      %581 = vmatpush2.msra.mxu0 0.0
      %582 = vmatprep.subr.mxu0 0.0
      %583 = vmatpush2.msra.mxu0 0.0
      %584 = vmatprep.subr.mxu0 0.0
      %585 = vmatpush2.msra.mxu0 0.0
      %586 = vmatprep.subr.mxu0 0.0
      %587 = vmatpush2.msra.mxu0 0.0
      %588 = vmatprep.mubr.f32.mxu0 0.0
      %589 = vmatmul.mubr.f32.gmra.mxu0 %v488
      %v590 = vpop.f32.mrf.mxu0
      %v591 = vadd.f32 %v523, %v590
      %v592 = vpop.f32.mrf.mxu0
      %593 = vmatprep.mubr.f32.mxu0 0.0
      %594 = vmatmul.mubr.f32.gmra.mxu0 %v489
      %v595 = vpop.f32.mrf.mxu0
      %v596 = vadd.f32 %v523, %v595
      %v597 = vpop.f32.mrf.mxu0
      %598 = vmatprep.mubr.f32.mxu0 0.0
      %599 = vmatmul.mubr.f32.gmra.mxu0 %v490
      %v600 = vpop.f32.mrf.mxu0
      %v601 = vadd.f32 %v523, %v600
      %v602 = vpop.f32.mrf.mxu0
      %603 = vmatprep.mubr.f32.mxu0 0.0
      %604 = vmatmul.mubr.f32.gmra.mxu0 %v491
      %v605 = vpop.f32.mrf.mxu0
      %v606 = vadd.f32 %v523, %v605
      %v607 = vpop.f32.mrf.mxu0
      %608 = vmatprep.mubr.f32.mxu0 0.0
      %609 = vmatmul.mubr.f32.gmra.mxu0 %v492
      %v610 = vpop.f32.mrf.mxu0
      %v611 = vadd.f32 %v523, %v610
      %v612 = vpop.f32.mrf.mxu0
      %613 = vmatprep.mubr.f32.mxu0 0.0
      %614 = vmatmul.mubr.f32.gmra.mxu0 %v493
      %v615 = vpop.f32.mrf.mxu0
      %v616 = vadd.f32 %v523, %v615
      %v617 = vpop.f32.mrf.mxu0
      %618 = vmatprep.mubr.f32.mxu0 0.0
      %619 = vmatmul.mubr.f32.gmra.mxu0 %v494
      %v620 = vpop.f32.mrf.mxu0
      %v621 = vadd.f32 %v523, %v620
      %v622 = vpop.f32.mrf.mxu0
      %623 = vmatprep.mubr.f32.mxu0 0.0
      %624 = vmatmul.mubr.f32.gmra.mxu0 %v495
      %v625 = vpop.f32.mrf.mxu0
      %v626 = vadd.f32 %v523, %v625
      %v627 = vpop.f32.mrf.mxu0
      %628 = vmatprep.mubr.f32.mxu0 0.0
      %629 = vmatmul.mubr.f32.gmra.mxu0 %v496
      %v630 = vpop.f32.mrf.mxu0
      %v631 = vadd.f32 %v523, %v630
      %v632 = vpop.f32.mrf.mxu0
      %633 = vmatprep.mubr.f32.mxu0 0.0
      %634 = vmatmul.mubr.f32.gmra.mxu0 %v497
      %v635 = vpop.f32.mrf.mxu0
      %v636 = vadd.f32 %v523, %v635
      %v637 = vpop.f32.mrf.mxu0
      %638 = vmatprep.mubr.f32.mxu0 0.0
      %639 = vmatmul.mubr.f32.gmra.mxu0 %v498
      %v640 = vpop.f32.mrf.mxu0
      %v641 = vadd.f32 %v523, %v640
      %v642 = vpop.f32.mrf.mxu0
      %643 = vmatprep.mubr.f32.mxu0 0.0
      %644 = vmatmul.mubr.f32.gmra.mxu0 %v499
      %v645 = vpop.f32.mrf.mxu0
      %v646 = vadd.f32 %v523, %v645
      %v647 = vpop.f32.mrf.mxu0
      %648 = vmatprep.mubr.f32.mxu0 0.0
      %649 = vmatmul.mubr.f32.gmra.mxu0 %v500
      %v650 = vpop.f32.mrf.mxu0
      %v651 = vadd.f32 %v523, %v650
      %v652 = vpop.f32.mrf.mxu0
      %653 = vmatprep.mubr.f32.mxu0 0.0
      %654 = vmatmul.mubr.f32.gmra.mxu0 %v501
      %v655 = vpop.f32.mrf.mxu0
      %v656 = vadd.f32 %v523, %v655
      %v657 = vpop.f32.mrf.mxu0
      %658 = vmatprep.mubr.f32.mxu0 0.0
      %659 = vmatmul.mubr.f32.gmra.mxu0 %v502
      %v660 = vpop.f32.mrf.mxu0
      %v661 = vadd.f32 %v523, %v660
      %v662 = vpop.f32.mrf.mxu0
      %663 = vmatprep.mubr.f32.mxu0 0.0
      %664 = vmatmul.mubr.f32.gmra.mxu0 %v503
      %v665 = vpop.f32.mrf.mxu0
      %v666 = vadd.f32 %v523, %v665
      %v667 = vpop.f32.mrf.mxu0
      %668 = vdwg.mxu0
      %v669 = vmul.f32 %v591, 0.01
      %v670 = vmul.f32 %v596, 0.01
      %v671 = vmul.f32 %v601, 0.01
      %v672 = vmul.f32 %v606, 0.01
      %v673 = vmul.f32 %v611, 0.01
      %v674 = vmul.f32 %v616, 0.01
      %v675 = vmul.f32 %v621, 0.01
      %v676 = vmul.f32 %v626, 0.01
      %v677 = vmul.f32 %v631, 0.01
      %v678 = vmul.f32 %v636, 0.01
      %v679 = vmul.f32 %v641, 0.01
      %v680 = vmul.f32 %v646, 0.01
      %v681 = vmul.f32 %v651, 0.01
      %v682 = vmul.f32 %v656, 0.01
      %v683 = vmul.f32 %v661, 0.01
      %v684 = vmul.f32 %v666, 0.01
      %v685 = vmax.f32 %v591, %v669
      %v686 = vmax.f32 %v596, %v670
      %v687 = vmax.f32 %v601, %v671
      %v688 = vmax.f32 %v606, %v672
      %v689 = vmax.f32 %v611, %v673
      %v690 = vmax.f32 %v616, %v674
      %v691 = vmax.f32 %v621, %v675
      %v692 = vmax.f32 %v626, %v676
      %v693 = vmax.f32 %v631, %v677
      %v694 = vmax.f32 %v636, %v678
      %v695 = vmax.f32 %v641, %v679
      %v696 = vmax.f32 %v646, %v680
      %v697 = vmax.f32 %v651, %v681
      %v698 = vmax.f32 %v656, %v682
      %v699 = vmax.f32 %v661, %v683
      %v700 = vmax.f32 %v666, %v684
      %v701 = vld [vmem:[%s4] sm:$0xff]
      %v702 = vld [vmem:[%s4 + $0x8] sm:$0xff]
      %v703 = vld [vmem:[%s4 + $0x10] sm:$0xff]
      %v704 = vld [vmem:[%s4 + $0x18] sm:$0xff]
      %v705 = vld [vmem:[%s4 + $0x20] sm:$0xff]
      %v706 = vld [vmem:[%s4 + $0x28] sm:$0xff]
      %v707 = vld [vmem:[%s4 + $0x30] sm:$0xff]
      %v708 = vld [vmem:[%s4 + $0x38] sm:$0xff]
      %v709 = vld [vmem:[%s4 + $0x40] sm:$0xff]
      %v710 = vld [vmem:[%s4 + $0x48] sm:$0xff]
      %v711 = vld [vmem:[%s4 + $0x50] sm:$0xff]
      %v712 = vld [vmem:[%s4 + $0x58] sm:$0xff]
      %v713 = vld [vmem:[%s4 + $0x60] sm:$0xff]
      %v714 = vld [vmem:[%s4 + $0x68] sm:$0xff]
      %v715 = vld [vmem:[%s4 + $0x70] sm:$0xff]
      %v716 = vld [vmem:[%s4 + $0x78] sm:$0xff]
      %v717 = vld [vmem:[%s5] sm:$0x1]
      %v719 = vlaneseq
      %v720 = vshrl.u32 %v719, 7
      %v721 = vsub.s32 0, %v720
      %v722 = vrot.slane %v717, %v721
      %724 = vmatprep.subr.mxu0 0.0
      %725 = vmatpush1.msra.mxu0 %v716
      %726 = vmatprep.subr.mxu0 0.0
      %727 = vmatpush1.msra.mxu0 %v715
      %728 = vmatprep.subr.mxu0 0.0
      %729 = vmatpush1.msra.mxu0 %v714
      %730 = vmatprep.subr.mxu0 0.0
      %731 = vmatpush1.msra.mxu0 %v713
      %732 = vmatprep.subr.mxu0 0.0
      %733 = vmatpush1.msra.mxu0 %v712
      %734 = vmatprep.subr.mxu0 0.0
      %735 = vmatpush1.msra.mxu0 %v711
      %736 = vmatprep.subr.mxu0 0.0
      %737 = vmatpush1.msra.mxu0 %v710
      %738 = vmatprep.subr.mxu0 0.0
      %739 = vmatpush1.msra.mxu0 %v709
      %740 = vmatprep.subr.mxu0 0.0
      %741 = vmatpush1.msra.mxu0 %v708
      %742 = vmatprep.subr.mxu0 0.0
      %743 = vmatpush1.msra.mxu0 %v707
      %744 = vmatprep.subr.mxu0 0.0
      %745 = vmatpush1.msra.mxu0 %v706
      %746 = vmatprep.subr.mxu0 0.0
      %747 = vmatpush1.msra.mxu0 %v705
      %748 = vmatprep.subr.mxu0 0.0
      %749 = vmatpush1.msra.mxu0 %v704
      %750 = vmatprep.subr.mxu0 0.0
      %751 = vmatpush1.msra.mxu0 %v703
      %752 = vmatprep.subr.mxu0 0.0
      %753 = vmatpush1.msra.mxu0 %v702
      %754 = vmatprep.subr.mxu0 0.0
      %755 = vmatpush1.msra.mxu0 %v701
      %756 = vmatprep.subr.mxu0 0.0
      %757 = vmatpush2.msra.mxu0 0.0
      %758 = vmatprep.subr.mxu0 0.0
      %759 = vmatpush2.msra.mxu0 0.0
      %760 = vmatprep.subr.mxu0 0.0
      %761 = vmatpush2.msra.mxu0 0.0
      %762 = vmatprep.subr.mxu0 0.0
      %763 = vmatpush2.msra.mxu0 0.0
      %764 = vmatprep.subr.mxu0 0.0
      %765 = vmatpush2.msra.mxu0 0.0
      %766 = vmatprep.subr.mxu0 0.0
      %767 = vmatpush2.msra.mxu0 0.0
      %768 = vmatprep.subr.mxu0 0.0
      %769 = vmatpush2.msra.mxu0 0.0
      %770 = vmatprep.subr.mxu0 0.0
      %771 = vmatpush2.msra.mxu0 0.0
      %772 = vmatprep.subr.mxu0 0.0
      %773 = vmatpush2.msra.mxu0 0.0
      %774 = vmatprep.subr.mxu0 0.0
      %775 = vmatpush2.msra.mxu0 0.0
      %776 = vmatprep.subr.mxu0 0.0
      %777 = vmatpush2.msra.mxu0 0.0
      %778 = vmatprep.subr.mxu0 0.0
      %779 = vmatpush2.msra.mxu0 0.0
      %780 = vmatprep.subr.mxu0 0.0
      %781 = vmatpush2.msra.mxu0 0.0
      %782 = vmatprep.subr.mxu0 0.0
      %783 = vmatpush2.msra.mxu0 0.0
      %784 = vmatprep.subr.mxu0 0.0
      %785 = vmatpush2.msra.mxu0 0.0
      %786 = vmatprep.subr.mxu0 0.0
      %787 = vmatpush2.msra.mxu0 0.0
      %788 = vmatprep.mubr.f32.mxu0 0.0
      %789 = vmatmul.mubr.f32.gmra.mxu0 %v685
      %v790 = vpop.f32.mrf.mxu0
      %v791 = vadd.f32 %v722, %v790
      %v792 = vpop.f32.mrf.mxu0
      %793 = vmatprep.mubr.f32.mxu0 0.0
      %794 = vmatmul.mubr.f32.gmra.mxu0 %v686
      %v795 = vpop.f32.mrf.mxu0
      %v796 = vadd.f32 %v722, %v795
      %v797 = vpop.f32.mrf.mxu0
      %798 = vmatprep.mubr.f32.mxu0 0.0
      %799 = vmatmul.mubr.f32.gmra.mxu0 %v687
      %v800 = vpop.f32.mrf.mxu0
      %v801 = vadd.f32 %v722, %v800
      %v802 = vpop.f32.mrf.mxu0
      %803 = vmatprep.mubr.f32.mxu0 0.0
      %804 = vmatmul.mubr.f32.gmra.mxu0 %v688
      %v805 = vpop.f32.mrf.mxu0
      %v806 = vadd.f32 %v722, %v805
      %v807 = vpop.f32.mrf.mxu0
      %808 = vmatprep.mubr.f32.mxu0 0.0
      %809 = vmatmul.mubr.f32.gmra.mxu0 %v689
      %v810 = vpop.f32.mrf.mxu0
      %v811 = vadd.f32 %v722, %v810
      %v812 = vpop.f32.mrf.mxu0
      %813 = vmatprep.mubr.f32.mxu0 0.0
      %814 = vmatmul.mubr.f32.gmra.mxu0 %v690
      %v815 = vpop.f32.mrf.mxu0
      %v816 = vadd.f32 %v722, %v815
      %v817 = vpop.f32.mrf.mxu0
      %818 = vmatprep.mubr.f32.mxu0 0.0
      %819 = vmatmul.mubr.f32.gmra.mxu0 %v691
      %v820 = vpop.f32.mrf.mxu0
      %v821 = vadd.f32 %v722, %v820
      %v822 = vpop.f32.mrf.mxu0
      %823 = vmatprep.mubr.f32.mxu0 0.0
      %824 = vmatmul.mubr.f32.gmra.mxu0 %v692
      %v825 = vpop.f32.mrf.mxu0
      %v826 = vadd.f32 %v722, %v825
      %v827 = vpop.f32.mrf.mxu0
      %828 = vmatprep.mubr.f32.mxu0 0.0
      %829 = vmatmul.mubr.f32.gmra.mxu0 %v693
      %v830 = vpop.f32.mrf.mxu0
      %v831 = vadd.f32 %v722, %v830
      %v832 = vpop.f32.mrf.mxu0
      %833 = vmatprep.mubr.f32.mxu0 0.0
      %834 = vmatmul.mubr.f32.gmra.mxu0 %v694
      %v835 = vpop.f32.mrf.mxu0
      %v836 = vadd.f32 %v722, %v835
      %v837 = vpop.f32.mrf.mxu0
      %838 = vmatprep.mubr.f32.mxu0 0.0
      %839 = vmatmul.mubr.f32.gmra.mxu0 %v695
      %v840 = vpop.f32.mrf.mxu0
      %v841 = vadd.f32 %v722, %v840
      %v842 = vpop.f32.mrf.mxu0
      %843 = vmatprep.mubr.f32.mxu0 0.0
      %844 = vmatmul.mubr.f32.gmra.mxu0 %v696
      %v845 = vpop.f32.mrf.mxu0
      %v846 = vadd.f32 %v722, %v845
      %v847 = vpop.f32.mrf.mxu0
      %848 = vmatprep.mubr.f32.mxu0 0.0
      %849 = vmatmul.mubr.f32.gmra.mxu0 %v697
      %v850 = vpop.f32.mrf.mxu0
      %v851 = vadd.f32 %v722, %v850
      %v852 = vpop.f32.mrf.mxu0
      %853 = vmatprep.mubr.f32.mxu0 0.0
      %854 = vmatmul.mubr.f32.gmra.mxu0 %v698
      %v855 = vpop.f32.mrf.mxu0
      %v856 = vadd.f32 %v722, %v855
      %v857 = vpop.f32.mrf.mxu0
      %858 = vmatprep.mubr.f32.mxu0 0.0
      %859 = vmatmul.mubr.f32.gmra.mxu0 %v699
      %v860 = vpop.f32.mrf.mxu0
      %v861 = vadd.f32 %v722, %v860
      %v862 = vpop.f32.mrf.mxu0
      %863 = vmatprep.mubr.f32.mxu0 0.0
      %864 = vmatmul.mubr.f32.gmra.mxu0 %v700
      %v865 = vpop.f32.mrf.mxu0
      %v866 = vadd.f32 %v722, %v865
      %v867 = vpop.f32.mrf.mxu0
      %868 = vdwg.mxu0
      %vm869 = vcmask 64512
      %870 = vst.msk [vmem:[%s253] sm:$0xff] %vm869, %v791
      %871 = vst.msk [vmem:[%s253 + $0x8] sm:$0xff] %vm869, %v796
      %872 = vst.msk [vmem:[%s253 + $0x10] sm:$0xff] %vm869, %v801
      %873 = vst.msk [vmem:[%s253 + $0x18] sm:$0xff] %vm869, %v806
      %874 = vst.msk [vmem:[%s253 + $0x20] sm:$0xff] %vm869, %v811
      %875 = vst.msk [vmem:[%s253 + $0x28] sm:$0xff] %vm869, %v816
      %876 = vst.msk [vmem:[%s253 + $0x30] sm:$0xff] %vm869, %v821
      %877 = vst.msk [vmem:[%s253 + $0x38] sm:$0xff] %vm869, %v826
      %878 = vst.msk [vmem:[%s253 + $0x40] sm:$0xff] %vm869, %v831
      %879 = vst.msk [vmem:[%s253 + $0x48] sm:$0xff] %vm869, %v836
      %880 = vst.msk [vmem:[%s253 + $0x50] sm:$0xff] %vm869, %v841
      %881 = vst.msk [vmem:[%s253 + $0x58] sm:$0xff] %vm869, %v846
      %882 = vst.msk [vmem:[%s253 + $0x60] sm:$0xff] %vm869, %v851
      %883 = vst.msk [vmem:[%s253 + $0x68] sm:$0xff] %vm869, %v856
      %884 = vst.msk [vmem:[%s253 + $0x70] sm:$0xff] %vm869, %v861
      %885 = vst.msk [vmem:[%s253 + $0x78] sm:$0xff] %vm869, %v866
      %s886 = smul.u32 16, %s17
      %p887 = scmp.lt.s32.totalorder %s886, 31
      %s888 = scalar_select %p887, %s886, 31
      %s889 = smul.addr %s888, 8
      %s890 = scalar_lea.vmem %s6, %s889
      // Predicated region
      $region45: #{tpu_custom_call.1} parent=43 // pred_check
        %p891 = pneg %p166
      $region46: #{tpu_custom_call.1} parent=43 // pred_check_branch
        %893 = sbr.rel (%p891) target = $region48
      $region47: #{tpu_custom_call.1} parent=43 // pred_region
        %s894 = smul.u32 16, %s17
      $region48: #{tpu_custom_call.1} parent=43 // pred_fallthru
        _
    $region44: #{tpu_custom_call.1} parent=5 // pred_fallthru
      _
    %p895 = scmp.le.s32.totalorder 2, %s12
    // Predicated region
    $region49: #{tpu_custom_call.1} parent=5 // pred_check
      %p896 = pneg %p895
    $region50: #{tpu_custom_call.1} parent=5 // pred_check_branch
      %898 = sbr.rel (%p896) target = $region52
    $region51: #{tpu_custom_call.1} parent=5 // pred_region
      %s899 = ssub.s32 %s12, 2
      // Predicated region
      $region53: #{tpu_custom_call.1} parent=51 // pred_check
        %p900 = pneg %p172
      $region54: #{tpu_custom_call.1} parent=51 // pred_check_branch
        %902 = sbr.rel (%p900) target = $region56
      $region55: #{tpu_custom_call.1} parent=51 // pred_region
        %s903 = smul.u32 16, %s18
        %p904 = scmp.lt.s32.totalorder %s903, 31
        %s905 = scalar_select %p904, %s903, 31
        %s906 = smul.addr %s905, 8
        %s907 = scalar_lea.vmem %s6, %s906
      $region56: #{tpu_custom_call.1} parent=51 // pred_fallthru
        _
    $region52: #{tpu_custom_call.1} parent=5 // pred_fallthru
      _
  $region6: #{tpu_custom_call.1} parent=0 // loop_footer
    %s16 = sadd.s32 1, %s12
  $region7: #{tpu_custom_call.1} parent=0 // loop_footer_branch
    %11 = sbr.rel target = $region3
  $region8: #{tpu_custom_call.1} parent=0 // loop_exit
    _

</llo_original>
